<compile_context>
chip_gen: v5e
topology: v5e:2x2
jax: 0.10.0
libtpu: 0.0.40
codegen_flags: <defaults>
</compile_context>

<pallas_src>
import functools

import jax
import jax.numpy as jnp
from jax.experimental import pallas as pl
from jax.experimental.pallas import tpu as pltpu

STATE_DIM = 16
ACTION_DIM = 3
HIDDEN = 64
BATCH = 2

N_HEADS = 3                                  # s, r, t heads per action
N_MLP = ACTION_DIM * N_HEADS                 # 9 packed MLPs
PACK_H = N_MLP * HIDDEN                      # 576 packed hidden units
GROUP = STATE_DIM + 2                        # 18 output lanes per action
PACK_OUT = 128                               # lane-dense packed output width

_VMEM = pl.BlockSpec(memory_space=pltpu.MemorySpace.VMEM)


# -----------------------------------------------------------------------------
# Kernels
# -----------------------------------------------------------------------------
def q_kernel(x_ref, w1_ref, b1_ref, w2_ref, b2_ref, wq_ref, bq_ref, out_ref):
    """FCBody(state_dim -> 64 -> 64, relu) + fc_q head (padded to 128 lanes)."""
    x = x_ref[...]                                                    # (B, S)
    h = jnp.maximum(
        jnp.dot(x, w1_ref[...], preferred_element_type=jnp.float32)
        + b1_ref[...], 0.0)
    h = jnp.maximum(
        jnp.dot(h, w2_ref[...], preferred_element_type=jnp.float32)
        + b2_ref[...], 0.0)
    out_ref[...] = (
        jnp.dot(h, wq_ref[...], preferred_element_type=jnp.float32)
        + bq_ref[...])                                                # (B, 128)


def model_kernel(x_ref, w1_ref, b1_ref, w2_ref, b2_ref, wh_ref, bh_ref,
                 resid_ref, tmask_ref, out_ref):
    """All 9 per-(action, head) MLPs as 3 wide / block-diagonal matmuls.

    Output slab (B, 128): per action a the lanes [a*18, a*18+18) hold
    [s(16) | r(1) | t(1)]; lanes >= 54 are zero padding.
    Residual x is injected into the s lanes via the static placement matrix
    `resid_ref`; sigmoid is applied on the t lanes via `tmask_ref`.
    """
    x = x_ref[...]                                                    # (B, S)
    h = jnp.maximum(
        jnp.dot(x, w1_ref[...], preferred_element_type=jnp.float32)
        + b1_ref[...], 0.0)                                           # (B, 576)
    h = jnp.maximum(
        jnp.dot(h, w2_ref[...], preferred_element_type=jnp.float32)
        + b2_ref[...], 0.0)                                           # (B, 576)
    z = (jnp.dot(h, wh_ref[...], preferred_element_type=jnp.float32)
         + bh_ref[...])                                               # (B, 128)
    resid = jnp.dot(x, resid_ref[...],
                    preferred_element_type=jnp.float32)               # (B, 128)
    tmask = tmask_ref[...]                                            # (1, 128)
    out_ref[...] = jnp.where(tmask > 0.5, jax.nn.sigmoid(z), z + resid)


# -----------------------------------------------------------------------------
# Wrappers
# -----------------------------------------------------------------------------
def q_forward(params, x):
    """flag == 'q': returns q values of shape (B, action_dim)."""
    B = x.shape[0]
    p = params["q_packed"]
    out = pl.pallas_call(
        q_kernel,
        out_shape=jax.ShapeDtypeStruct((B, PACK_OUT), jnp.float32),
        in_specs=[_VMEM] * 7,
        out_specs=_VMEM,
    )(x, p["W1"], p["b1"], p["W2"], p["b2"], p["Wq"], p["bq"])
    return out[:, :ACTION_DIM]


def model_forward(params, x):
    """flag == 'model': returns (s, r, t) with shapes
    (B, A, state_dim), (B, A, 1), (B, A, 1)."""
    B = x.shape[0]
    p = params["model_packed"]
    out = pl.pallas_call(
        model_kernel,
        out_shape=jax.ShapeDtypeStruct((B, PACK_OUT), jnp.float32),
        in_specs=[_VMEM] * 9,
        out_specs=_VMEM,
    )(x, p["W1"], p["b1"], p["W2"], p["b2"], p["Wh"], p["bh"],
      p["resid"], p["tmask"])
    # Slab is already in (B, action, [s|r|t]) order -> plain slices, no
    # transposes.
    g = out[:, :ACTION_DIM * GROUP].reshape(B, ACTION_DIM, GROUP)
    s = g[:, :, :STATE_DIM]
    r = g[:, :, STATE_DIM:STATE_DIM + 1]
    t = g[:, :, STATE_DIM + 1:STATE_DIM + 2]
    return s, r, t


@functools.partial(jax.jit, static_argnames="flag")
def nonlinear_dyna_q_forward(params, x, flag):
    if flag == "q":
        return q_forward(params, x)
    elif flag == "model":
        return model_forward(params, x)
    else:
        raise NotImplementedError


# -----------------------------------------------------------------------------
# Deterministic parameter construction (synthetic init, no checkpoint)
# -----------------------------------------------------------------------------
def make_params(key):
    def lin(k, fan_in, fan_out, scale=None):
        kw, kb = jax.random.split(k)
        scale = (1.0 / jnp.sqrt(fan_in)) if scale is None else scale
        W = scale * jax.random.normal(kw, (fan_in, fan_out), jnp.float32)
        b = scale * jax.random.normal(kb, (1, fan_out), jnp.float32)
        return W, b

    keys = jax.random.split(key, 4)
    params = {}

    # q path: single FCBody + fc_q head.
    kq = jax.random.split(keys[0], 3)
    W1, b1 = lin(kq[0], STATE_DIM, HIDDEN)
    W2, b2 = lin(kq[1], HIDDEN, HIDDEN)
    Wq, bq = lin(kq[2], HIDDEN, ACTION_DIM, scale=1e-3)
    params["q"] = dict(W1=W1, b1=b1, W2=W2, b2=b2, Wq=Wq, bq=bq)

    # model path: per-action FCBody + head, stacked along leading action axis.
    def stacked(k, head_dim):
        ks = jax.random.split(k, ACTION_DIM)
        W1s, b1s, W2s, b2s, Whs, bhs = [], [], [], [], [], []
        for a in range(ACTION_DIM):
            ka = jax.random.split(ks[a], 3)
            w1, bb1 = lin(ka[0], STATE_DIM, HIDDEN)
            w2, bb2 = lin(ka[1], HIDDEN, HIDDEN)
            wh, bbh = lin(ka[2], HIDDEN, head_dim, scale=1e-3)
            W1s.append(w1); b1s.append(bb1)
            W2s.append(w2); b2s.append(bb2)
            Whs.append(wh); bhs.append(bbh)
        return dict(W1=jnp.stack(W1s), b1=jnp.stack(b1s),
                    W2=jnp.stack(W2s), b2=jnp.stack(b2s),
                    Wh=jnp.stack(Whs), bh=jnp.stack(bhs))

    params["s"] = stacked(keys[1], STATE_DIM)
    params["r"] = stacked(keys[2], 1)
    params["t"] = stacked(keys[3], 1)
    return params


def pack_params(params):
    """One-time offline packing of the 9 model MLPs + q head padding."""
    params = dict(params)

    # --- q path: pad head to PACK_OUT lanes (full unmasked lane-dense store).
    q = params["q"]
    Wq = jnp.zeros((HIDDEN, PACK_OUT), jnp.float32).at[:, :ACTION_DIM].set(q["Wq"])
    bq = jnp.zeros((1, PACK_OUT), jnp.float32).at[:, :ACTION_DIM].set(q["bq"])
    params["q_packed"] = dict(W1=q["W1"], b1=q["b1"],
                              W2=q["W2"], b2=q["b2"], Wq=Wq, bq=bq)

    # --- model path: wide W1, block-diagonal W2 and head. -------------------
    # MLP index m = a*3 + h, h in {0:s, 1:r, 2:t}; hidden slice [m*64,(m+1)*64).
    # Output lane layout: s -> [a*18, a*18+16), r -> a*18+16, t -> a*18+17.
    W1p = jnp.zeros((STATE_DIM, PACK_H), jnp.float32)
    b1p = jnp.zeros((1, PACK_H), jnp.float32)
    W2p = jnp.zeros((PACK_H, PACK_H), jnp.float32)
    b2p = jnp.zeros((1, PACK_H), jnp.float32)
    Whp = jnp.zeros((PACK_H, PACK_OUT), jnp.float32)
    bhp = jnp.zeros((1, PACK_OUT), jnp.float32)

    head_names = ("s", "r", "t")
    for a in range(ACTION_DIM):
        for h, name in enumerate(head_names):
            g = params[name]
            m = a * N_HEADS + h
            lo, hi = m * HIDDEN, (m + 1) * HIDDEN
            W1p = W1p.at[:, lo:hi].set(g["W1"][a])
            b1p = b1p.at[:, lo:hi].set(g["b1"][a])
            W2p = W2p.at[lo:hi, lo:hi].set(g["W2"][a])
            b2p = b2p.at[:, lo:hi].set(g["b2"][a])
            if name == "s":
                c0, width = a * GROUP, STATE_DIM
            elif name == "r":
                c0, width = a * GROUP + STATE_DIM, 1
            else:
                c0, width = a * GROUP + STATE_DIM + 1, 1
            Whp = Whp.at[lo:hi, c0:c0 + width].set(g["Wh"][a])
            bhp = bhp.at[:, c0:c0 + width].set(g["bh"][a])

    # Static residual-placement matrix (x -> s lanes of every action group)
    # and lane mask marking the t lanes (sigmoid applied in kernel).
    resid = jnp.zeros((STATE_DIM, PACK_OUT), jnp.float32)
    tmask = jnp.zeros((1, PACK_OUT), jnp.float32)
    rows = jnp.arange(STATE_DIM)
    for a in range(ACTION_DIM):
        resid = resid.at[rows, a * GROUP + rows].set(1.0)
        tmask = tmask.at[0, a * GROUP + STATE_DIM + 1].set(1.0)

    params["model_packed"] = dict(W1=W1p, b1=b1p, W2=W2p, b2=b2p,
                                  Wh=Whp, bh=bhp, resid=resid, tmask=tmask)
    return params


# -----------------------------------------------------------------------------
# Pure-JAX reference (uses the UNpacked params -> also validates the packing)
# -----------------------------------------------------------------------------
def ref_forward(params, x, flag):
    def mlp(x, g, a=None):
        idx = (lambda z: z[a]) if a is not None else (lambda z: z)
        h = jnp.maximum(x @ idx(g["W1"]) + idx(g["b1"]), 0.0)
        h = jnp.maximum(h @ idx(g["W2"]) + idx(g["b2"]), 0.0)
        Wh = g["Wq"] if "Wq" in g else g["Wh"]
        bh = g["bq"] if "bq" in g else g["bh"]
        return h @ idx(Wh) + idx(bh)

    if flag == "q":
        return mlp(x, params["q"])
    s_list, r_list, t_list = [], [], []
    for a in range(ACTION_DIM):
        s_list.append(x + mlp(x, params["s"], a))
        r_list.append(mlp(x, params["r"], a))
        t_list.append(jax.nn.sigmoid(mlp(x, params["t"], a)))
    s = jnp.stack(s_list, axis=1)
    r = jnp.stack(r_list, axis=1)
    t = jnp.stack(t_list, axis=1)
    return s, r, t


# -----------------------------------------------------------------------------
if __name__ == "__main__":
    key = jax.random.PRNGKey(0)
    kp, kx = jax.random.split(key)
    params = pack_params(make_params(kp))
    x = jax.random.normal(kx, (BATCH, STATE_DIM), jnp.float32)

    # q path
    q = nonlinear_dyna_q_forward(params, x, "q")
    q = jax.block_until_ready(q)
    assert q.shape == (BATCH, ACTION_DIM)

    # model path
    s, r, t = nonlinear_dyna_q_forward(params, x, "model")
    s, r, t = jax.block_until_ready((s, r, t))
    assert s.shape == (BATCH, ACTION_DIM, STATE_DIM)
    assert r.shape == (BATCH, ACTION_DIM, 1)
    assert t.shape == (BATCH, ACTION_DIM, 1)

    # Correctness vs pure-JAX reference (unpacked weights).
    q_ref = ref_forward(params, x, "q")
    s_ref, r_ref, t_ref = ref_forward(params, x, "model")
    assert jnp.allclose(q, q_ref, atol=1e-4), "q mismatch"
    assert jnp.allclose(s, s_ref, atol=1e-4), "s mismatch"
    assert jnp.allclose(r, r_ref, atol=1e-4), "r mismatch"
    assert jnp.allclose(t, t_ref, atol=1e-4), "t mismatch"

    print("KERNEL_OK")
</pallas_src>

<mosaic_0001>
module attributes {stable_mosaic.version = 11 : i64} {
  func.func @q_kernel(%arg0: memref<2x16xf32, #tpu.memory_space<vmem>>, %arg1: memref<16x64xf32, #tpu.memory_space<vmem>>, %arg2: memref<1x64xf32, #tpu.memory_space<vmem>>, %arg3: memref<64x64xf32, #tpu.memory_space<vmem>>, %arg4: memref<1x64xf32, #tpu.memory_space<vmem>>, %arg5: memref<64x128xf32, #tpu.memory_space<vmem>>, %arg6: memref<1x128xf32, #tpu.memory_space<vmem>>, %arg7: memref<2x128xf32, #tpu.memory_space<vmem>>) attributes {dimension_semantics = [], scalar_prefetch = 0 : i64, scratch_operands = 0 : i64, tpu.core_type = #tpu.core_type<tc>} {
    %c0 = arith.constant 0 : index
    %c0_0 = arith.constant 0 : index
    %0 = vector.load %arg0[%c0, %c0_0] : memref<2x16xf32, #tpu.memory_space<vmem>>, vector<2x16xf32>
    %c0_1 = arith.constant 0 : index
    %c0_2 = arith.constant 0 : index
    %1 = vector.load %arg1[%c0_1, %c0_2] : memref<16x64xf32, #tpu.memory_space<vmem>>, vector<16x64xf32>
    %cst = arith.constant dense<0.000000e+00> : vector<2x64xf32>
    %2 = tpu.matmul %0, %1, %cst {dimension_numbers = #tpu.dot_dimension_numbers<[1], [0], [0], [1], [0, 0, 1, 1], [], []>} : vector<2x16xf32>, vector<16x64xf32>, vector<2x64xf32> -> vector<2x64xf32>
    %c0_3 = arith.constant 0 : index
    %c0_4 = arith.constant 0 : index
    %3 = vector.load %arg2[%c0_3, %c0_4] : memref<1x64xf32, #tpu.memory_space<vmem>>, vector<1x64xf32>
    %4 = vector.broadcast %3 : vector<1x64xf32> to vector<2x64xf32>
    %5 = arith.addf %2, %4 : vector<2x64xf32>
    %cst_5 = arith.constant 0.000000e+00 : f32
    %6 = vector.broadcast %cst_5 : f32 to vector<2x64xf32>
    %7 = arith.maximumf %5, %6 : vector<2x64xf32>
    %c0_6 = arith.constant 0 : index
    %c0_7 = arith.constant 0 : index
    %8 = vector.load %arg3[%c0_6, %c0_7] : memref<64x64xf32, #tpu.memory_space<vmem>>, vector<64x64xf32>
    %cst_8 = arith.constant dense<0.000000e+00> : vector<2x64xf32>
    %9 = tpu.matmul %7, %8, %cst_8 {dimension_numbers = #tpu.dot_dimension_numbers<[1], [0], [0], [1], [0, 0, 1, 1], [], []>} : vector<2x64xf32>, vector<64x64xf32>, vector<2x64xf32> -> vector<2x64xf32>
    %c0_9 = arith.constant 0 : index
    %c0_10 = arith.constant 0 : index
    %10 = vector.load %arg4[%c0_9, %c0_10] : memref<1x64xf32, #tpu.memory_space<vmem>>, vector<1x64xf32>
    %11 = vector.broadcast %10 : vector<1x64xf32> to vector<2x64xf32>
    %12 = arith.addf %9, %11 : vector<2x64xf32>
    %cst_11 = arith.constant 0.000000e+00 : f32
    %13 = vector.broadcast %cst_11 : f32 to vector<2x64xf32>
    %14 = arith.maximumf %12, %13 : vector<2x64xf32>
    %c0_12 = arith.constant 0 : index
    %c0_13 = arith.constant 0 : index
    %15 = vector.load %arg5[%c0_12, %c0_13] : memref<64x128xf32, #tpu.memory_space<vmem>>, vector<64x128xf32>
    %cst_14 = arith.constant dense<0.000000e+00> : vector<2x128xf32>
    %16 = tpu.matmul %14, %15, %cst_14 {dimension_numbers = #tpu.dot_dimension_numbers<[1], [0], [0], [1], [0, 0, 1, 1], [], []>} : vector<2x64xf32>, vector<64x128xf32>, vector<2x128xf32> -> vector<2x128xf32>
    %c0_15 = arith.constant 0 : index
    %c0_16 = arith.constant 0 : index
    %17 = vector.load %arg6[%c0_15, %c0_16] : memref<1x128xf32, #tpu.memory_space<vmem>>, vector<1x128xf32>
    %18 = vector.broadcast %17 : vector<1x128xf32> to vector<2x128xf32>
    %19 = arith.addf %16, %18 : vector<2x128xf32>
    %c0_17 = arith.constant 0 : index
    %c0_18 = arith.constant 0 : index
    %20 = vector.load %arg7[%c0_17, %c0_18] : memref<2x128xf32, #tpu.memory_space<vmem>>, vector<2x128xf32>
    tpu.vector_store %arg7[%c0_17, %c0_18], %19 {strides = array<i32>} : memref<2x128xf32, #tpu.memory_space<vmem>>, vector<2x128xf32>,
    return
  }
}

</mosaic_0001>

<llo_original>
// kernel: nonlinear_dyna_q_forward.1
$region0: #{nonlinear_dyna_q_forward.1}
  #allocation0 [shape = 'u32[]', space=smem, size = 0x4, offset = 0x4, fixed_abs, tag = 'smem constant byte address 0x4 - core index']
  #allocation1 [shape = 'u32[72,128]{1,0:T(1,128)}', space=vmem, size = 0x9000, scoped, tag = 'internal scratch']
  %s0 = inlined_call_operand.vmem [shape: f32[2,16], index: 0, kind: input, shape index: {}]
  %s1 = inlined_call_operand.hbm [shape: f32[16,64], index: 1, kind: input, shape index: {}]
  %s2 = inlined_call_operand.vmem [shape: f32[1,64], index: 2, kind: input, shape index: {}]
  %s3 = inlined_call_operand.hbm [shape: f32[64,64], index: 3, kind: input, shape index: {}]
  %s4 = inlined_call_operand.hbm [shape: f32[1,64], index: 4, kind: input, shape index: {}]
  %s5 = inlined_call_operand.hbm [shape: f32[64,128], index: 5, kind: input, shape index: {}]
  %s6 = inlined_call_operand.vmem [shape: f32[1,128], index: 6, kind: input, shape index: {}]
  %s7 = inlined_call_operand.hbm [shape: f32[2,128], index: 7, kind: output, shape index: {}]
  %s8 = sld [smem:[#allocation0]]
  $region54: #{nonlinear_dyna_q_forward.1} parent=0
    _
  %s10 = ssub.s32 1, %s8
  %s11 = scalar_select 0, %s10, %s8
  $region1: #{nonlinear_dyna_q_forward.1} parent=0
    #allocation2 [shape = 'u8[8192]{0}', space=vmem, size = 0x2000, scoped, tag = 'input window, operand 1, single buffered']
    #allocation3 [shape = 's32[1]{0}', space=sflag, size = 0x4, scoped, tag = 'scoped memory for nonlinear_dyna_q_forward.1']
    #allocation4 [shape = 's32[1]{0}', space=sflag, size = 0x4, scoped, tag = 'scoped memory for nonlinear_dyna_q_forward.1']
    #allocation5 [shape = 'u8[32768]{0}', space=vmem, size = 0x8000, scoped, tag = 'input window, operand 3, single buffered']
    #allocation6 [shape = 's32[1]{0}', space=sflag, size = 0x4, scoped, tag = 'scoped memory for nonlinear_dyna_q_forward.1']
    #allocation7 [shape = 'u8[512]{0}', space=vmem, size = 0x400, scoped, tag = 'input window, operand 4, single buffered']
    #allocation8 [shape = 'u8[32768]{0}', space=vmem, size = 0x8000, scoped, tag = 'input window, operand 5, single buffered']
    #allocation9 [shape = 's32[1]{0}', space=sflag, size = 0x4, scoped, tag = 'scoped memory for nonlinear_dyna_q_forward.1']
    #allocation10 [shape = 'u8[1024]{0}', space=vmem, size = 0x400, scoped, tag = 'output window, operand 0, single buffered']
    %12 = vsyncpa [#allocation3], 0
    %13 = vsyncpa [#allocation6], 0
    %14 = vsyncpa [#allocation9], 0
    %15 = vsyncpa [#allocation4], 0
    // Predicated region
    $region2: #{nonlinear_dyna_q_forward.1} parent=1 // pred_check
      _
    $region3: #{nonlinear_dyna_q_forward.1} parent=1 // pred_check_branch
      %17 = sbr.rel (0) target = $region5
    $region4: #{nonlinear_dyna_q_forward.1} parent=1 // pred_region
      _
    $region5: #{nonlinear_dyna_q_forward.1} parent=1 // pred_fallthru
      _
    // Predicated region
    $region6: #{nonlinear_dyna_q_forward.1} parent=1 // pred_check
      _
    $region7: #{nonlinear_dyna_q_forward.1} parent=1 // pred_check_branch
      %19 = sbr.rel (0) target = $region9
    $region8: #{nonlinear_dyna_q_forward.1} parent=1 // pred_region
      %21 = vsyncadd [#allocation3], 0
      %s22 = sshll.u32 %s1, 4
      %s23 = int_to_ptr.hbm [resolvable:$true] %s22
      %s24 = sshll.u32 [#allocation2], 4
      %s25 = int_to_ptr.vmem [resolvable:$true] %s24
      %30 = dma.hbm_to_vmem [thread:$0]  %s23, 256, %s25, [#allocation3], 128, 128, 8
    $region9: #{nonlinear_dyna_q_forward.1} parent=1 // pred_fallthru
      _
    // Predicated region
    $region10: #{nonlinear_dyna_q_forward.1} parent=1 // pred_check
      _
    $region11: #{nonlinear_dyna_q_forward.1} parent=1 // pred_check_branch
      %32 = sbr.rel (0) target = $region13
    $region12: #{nonlinear_dyna_q_forward.1} parent=1 // pred_region
      _
    $region13: #{nonlinear_dyna_q_forward.1} parent=1 // pred_fallthru
      _
    // Predicated region
    $region14: #{nonlinear_dyna_q_forward.1} parent=1 // pred_check
      _
    $region15: #{nonlinear_dyna_q_forward.1} parent=1 // pred_check_branch
      %34 = sbr.rel (0) target = $region17
    $region16: #{nonlinear_dyna_q_forward.1} parent=1 // pred_region
      %36 = vsyncadd [#allocation6], 0
      %s37 = sshll.u32 %s3, 4
      %s38 = int_to_ptr.hbm [resolvable:$true] %s37
      %s39 = sshll.u32 [#allocation5], 4
      %s40 = int_to_ptr.vmem [resolvable:$true] %s39
      %45 = dma.hbm_to_vmem [thread:$0]  %s38, 1024, %s40, [#allocation6], 128, 128, 8
    $region17: #{nonlinear_dyna_q_forward.1} parent=1 // pred_fallthru
      _
    // Predicated region
    $region18: #{nonlinear_dyna_q_forward.1} parent=1 // pred_check
      _
    $region19: #{nonlinear_dyna_q_forward.1} parent=1 // pred_check_branch
      %47 = sbr.rel (0) target = $region21
    $region20: #{nonlinear_dyna_q_forward.1} parent=1 // pred_region
      %49 = vsyncadd [#allocation6], 0
      %s51 = sshll.u32 %s4, 4
      %s52 = int_to_ptr.hbm [resolvable:$true] %s51
      %s53 = sshll.u32 [#allocation7], 4
      %s54 = int_to_ptr.vmem [resolvable:$true] %s53
      %56 = dma.hbm_to_vmem [thread:$0]  %s52, 16, %s54, [#allocation6]
    $region21: #{nonlinear_dyna_q_forward.1} parent=1 // pred_fallthru
      _
    // Predicated region
    $region22: #{nonlinear_dyna_q_forward.1} parent=1 // pred_check
      _
    $region23: #{nonlinear_dyna_q_forward.1} parent=1 // pred_check_branch
      %58 = sbr.rel (0) target = $region25
    $region24: #{nonlinear_dyna_q_forward.1} parent=1 // pred_region
      %60 = vsyncadd [#allocation9], 0
      %s61 = sshll.u32 %s5, 4
      %s62 = int_to_ptr.hbm [resolvable:$true] %s61
      %s63 = sshll.u32 [#allocation8], 4
      %s64 = int_to_ptr.vmem [resolvable:$true] %s63
      %69 = dma.hbm_to_vmem [thread:$0]  %s62, 1024, %s64, [#allocation9], 128, 128, 8
    $region25: #{nonlinear_dyna_q_forward.1} parent=1 // pred_fallthru
      _
    // Predicated region
    $region26: #{nonlinear_dyna_q_forward.1} parent=1 // pred_check
      _
    $region27: #{nonlinear_dyna_q_forward.1} parent=1 // pred_check_branch
      %71 = sbr.rel (0) target = $region29
    $region28: #{nonlinear_dyna_q_forward.1} parent=1 // pred_region
      _
    $region29: #{nonlinear_dyna_q_forward.1} parent=1 // pred_fallthru
      _
    // Predicated region
    $region30: #{nonlinear_dyna_q_forward.1} parent=1 // pred_check
      _
    $region31: #{nonlinear_dyna_q_forward.1} parent=1 // pred_check_branch
      %73 = sbr.rel (0) target = $region33
    $region32: #{nonlinear_dyna_q_forward.1} parent=1 // pred_region
      %75 = dma.done [#allocation3], 256
    $region33: #{nonlinear_dyna_q_forward.1} parent=1 // pred_fallthru
      _
    // Predicated region
    $region34: #{nonlinear_dyna_q_forward.1} parent=1 // pred_check
      _
    $region35: #{nonlinear_dyna_q_forward.1} parent=1 // pred_check_branch
      %77 = sbr.rel (0) target = $region37
    $region36: #{nonlinear_dyna_q_forward.1} parent=1 // pred_region
      %79 = dma.done [#allocation6], 1024
    $region37: #{nonlinear_dyna_q_forward.1} parent=1 // pred_fallthru
      _
    // Predicated region
    $region38: #{nonlinear_dyna_q_forward.1} parent=1 // pred_check
      _
    $region39: #{nonlinear_dyna_q_forward.1} parent=1 // pred_check_branch
      %81 = sbr.rel (0) target = $region41
    $region40: #{nonlinear_dyna_q_forward.1} parent=1 // pred_region
      %83 = dma.done [#allocation6], 16
    $region41: #{nonlinear_dyna_q_forward.1} parent=1 // pred_fallthru
      _
    // Predicated region
    $region42: #{nonlinear_dyna_q_forward.1} parent=1 // pred_check
      _
    $region43: #{nonlinear_dyna_q_forward.1} parent=1 // pred_check_branch
      %85 = sbr.rel (0) target = $region45
    $region44: #{nonlinear_dyna_q_forward.1} parent=1 // pred_region
      %87 = dma.done [#allocation9], 1024
    $region45: #{nonlinear_dyna_q_forward.1} parent=1 // pred_fallthru
      _
    %v88 = vld [vmem:[%s0] sm:$0x3]
    %v89 = vld [vmem:[#allocation2] sm:$0xff]
    %v90 = vld [vmem:[#allocation2 + $0x8] sm:$0xff]
    %v91 = vld [vmem:[%s2] sm:$0x1]
    %v93 = vperm.slane %v91, 0
    %vm95 = vcmask 130048
    %v97 = vsel %vm95, %v88, 0
    %99 = vmatpush.msra.mxu0 0.0
    %100 = vmatpush.msra.mxu0 0.0
    %101 = vmatpush.msra.mxu0 0.0
    %102 = vmatpush.msra.mxu0 0.0
    %103 = vmatpush.msra.mxu0 0.0
    %104 = vmatpush.msra.mxu0 0.0
    %105 = vmatpush.msra.mxu0 0.0
    %106 = vmatpush.msra.mxu0 0.0
    %107 = vmatpush.msra.mxu0 0.0
    %108 = vmatpush.msra.mxu0 0.0
    %109 = vmatpush.msra.mxu0 0.0
    %110 = vmatpush.msra.mxu0 0.0
    %111 = vmatpush.msra.mxu0 0.0
    %112 = vmatpush.msra.mxu0 0.0
    %113 = vmatpush.msra.mxu0 %v90
    %114 = vmatpush.msra.mxu0 %v89
    %115 = vmatmul.f32.gmra.mxu0 %v97
    %v116 = vpop.f32.mrf.mxu0
    %v117 = vadd.f32 %v93, %v116
    %118 = vdwg.mxu0
    %v119 = vmax.f32 %v117, 0.0
    %v120 = vld [vmem:[#allocation5] sm:$0xff]
    %v121 = vld [vmem:[#allocation5 + $0x8] sm:$0xff]
    %v122 = vld [vmem:[#allocation5 + $0x10] sm:$0xff]
    %v123 = vld [vmem:[#allocation5 + $0x18] sm:$0xff]
    %v124 = vld [vmem:[#allocation5 + $0x20] sm:$0xff]
    %v125 = vld [vmem:[#allocation5 + $0x28] sm:$0xff]
    %v126 = vld [vmem:[#allocation5 + $0x30] sm:$0xff]
    %v127 = vld [vmem:[#allocation5 + $0x38] sm:$0xff]
    %v128 = vld [vmem:[#allocation7] sm:$0x1]
    %v130 = vperm.slane %v128, 0
    %vm132 = vcmask 523264
    %v134 = vsel %vm132, %v119, 0
    %136 = vmatpush.msra.mxu0 0.0
    %137 = vmatpush.msra.mxu0 0.0
    %138 = vmatpush.msra.mxu0 0.0
    %139 = vmatpush.msra.mxu0 0.0
    %140 = vmatpush.msra.mxu0 0.0
    %141 = vmatpush.msra.mxu0 0.0
    %142 = vmatpush.msra.mxu0 0.0
    %143 = vmatpush.msra.mxu0 0.0
    %144 = vmatpush.msra.mxu0 %v127
    %145 = vmatpush.msra.mxu0 %v126
    %146 = vmatpush.msra.mxu0 %v125
    %147 = vmatpush.msra.mxu0 %v124
    %148 = vmatpush.msra.mxu0 %v123
    %149 = vmatpush.msra.mxu0 %v122
    %150 = vmatpush.msra.mxu0 %v121
    %151 = vmatpush.msra.mxu0 %v120
    %152 = vmatmul.f32.gmra.mxu0 %v134
    %v153 = vpop.f32.mrf.mxu0
    %v154 = vadd.f32 %v130, %v153
    %155 = vdwg.mxu0
    %v156 = vmax.f32 %v154, 0.0
    %v157 = vld [vmem:[#allocation8] sm:$0xff]
    %v158 = vld [vmem:[#allocation8 + $0x8] sm:$0xff]
    %v159 = vld [vmem:[#allocation8 + $0x10] sm:$0xff]
    %v160 = vld [vmem:[#allocation8 + $0x18] sm:$0xff]
    %v161 = vld [vmem:[#allocation8 + $0x20] sm:$0xff]
    %v162 = vld [vmem:[#allocation8 + $0x28] sm:$0xff]
    %v163 = vld [vmem:[#allocation8 + $0x30] sm:$0xff]
    %v164 = vld [vmem:[#allocation8 + $0x38] sm:$0xff]
    %v165 = vld [vmem:[%s6] sm:$0x1]
    %v167 = vperm.slane %v165, 0
    %v170 = vsel %vm132, %v156, 0
    %172 = vmatpush.msra.mxu0 0.0
    %173 = vmatpush.msra.mxu0 0.0
    %174 = vmatpush.msra.mxu0 0.0
    %175 = vmatpush.msra.mxu0 0.0
    %176 = vmatpush.msra.mxu0 0.0
    %177 = vmatpush.msra.mxu0 0.0
    %178 = vmatpush.msra.mxu0 0.0
    %179 = vmatpush.msra.mxu0 0.0
    %180 = vmatpush.msra.mxu0 %v164
    %181 = vmatpush.msra.mxu0 %v163
    %182 = vmatpush.msra.mxu0 %v162
    %183 = vmatpush.msra.mxu0 %v161
    %184 = vmatpush.msra.mxu0 %v160
    %185 = vmatpush.msra.mxu0 %v159
    %186 = vmatpush.msra.mxu0 %v158
    %187 = vmatpush.msra.mxu0 %v157
    %188 = vmatmul.f32.gmra.mxu0 %v170
    %v189 = vpop.f32.mrf.mxu0
    %v190 = vadd.f32 %v167, %v189
    %191 = vdwg.mxu0
    %192 = vst [vmem:[#allocation10] sm:$0x3] %v190
    // Predicated region
    $region46: #{nonlinear_dyna_q_forward.1} parent=1 // pred_check
      _
    $region47: #{nonlinear_dyna_q_forward.1} parent=1 // pred_check_branch
      %194 = sbr.rel (0) target = $region49
    $region48: #{nonlinear_dyna_q_forward.1} parent=1 // pred_region
      %196 = vsyncadd [#allocation4], 0
      %s198 = sshll.u32 [#allocation10], 4
      %s199 = int_to_ptr.vmem [resolvable:$true] %s198
      %s200 = sshll.u32 %s7, 4
      %s201 = int_to_ptr.hbm [resolvable:$true] %s200
      %203 = dma.vmem_to_hbm [thread:$0]  %s199, 32, %s201, [#allocation4]
    $region49: #{nonlinear_dyna_q_forward.1} parent=1 // pred_fallthru
      _
    // Predicated region
    $region50: #{nonlinear_dyna_q_forward.1} parent=1 // pred_check
      _
    $region51: #{nonlinear_dyna_q_forward.1} parent=1 // pred_check_branch
      %205 = sbr.rel (0) target = $region53
    $region52: #{nonlinear_dyna_q_forward.1} parent=1 // pred_region
      %207 = dma.done [#allocation4], 32
    $region53: #{nonlinear_dyna_q_forward.1} parent=1 // pred_fallthru
      _
    %208 = vsyncpa [#allocation3], 1
    %209 = vsyncpa [#allocation6], 1
    %210 = vsyncpa [#allocation9], 1
    %211 = vsyncpa [#allocation4], 1

</llo_original>
